<compile_context>
chip_gen: v5e
topology: v5e:2x2
jax: 0.10.0
libtpu: 0.0.40
codegen_flags: <defaults>
</compile_context>

<pallas_src>
import functools

import jax
import jax.numpy as jnp
from jax import lax
from jax.experimental import pallas as pl
from jax.experimental.pallas import tpu as pltpu


def _round_up(x, m):
    return (x + m - 1) // m * m


def _tpu_info():
    try:
        fn = getattr(pltpu, "get_tpu_info", None)
        return fn() if fn is not None else None
    except Exception:
        return None


def _vmem_capacity_bytes():
    info = _tpu_info()
    if info is not None:
        for attr in ("vmem_capacity_bytes", "vmem_bytes"):
            v = getattr(info, attr, None)
            if isinstance(v, int) and v > 0:
                return v
    return 64 * 1024 * 1024  # conservative default (v7x-sized)


def _num_tensorcores():
    info = _tpu_info()
    if info is not None:
        for attr in ("num_cores", "core_count", "num_tensorcores",
                     "tensorcores_per_chip", "cores_per_chip"):
            v = getattr(info, attr, None)
            if isinstance(v, int) and v > 0:
                return v
    try:
        v = getattr(jax.devices()[0], "num_cores", None)
        if isinstance(v, int) and v > 0:
            return v
    except Exception:
        pass
    return 1


# ----------------------------------------------------------------------------
# Kernels
# ----------------------------------------------------------------------------
def _hopfield_single_kernel(r_ref, wkT_ref, wv_ref, o_ref, *,
                            mask_width, approx_recip):
    """Whole (padded) stored-pattern axis in one tile: plain softmax, no scratch."""
    # r: (TB, n_pad) @ wkT: (n_pad, w_pad) -> f32 scores (beta already folded in).
    s = jnp.dot(r_ref[...], wkT_ref[...], preferred_element_type=jnp.float32)
    if mask_width is not None:  # fallback mask (only when no spare feature col)
        col = lax.broadcasted_iota(jnp.int32, s.shape, 1)
        s = jnp.where(col < mask_width, s, -jnp.inf)
    m = jnp.max(s, axis=-1, keepdims=True)
    p = jnp.exp(s - m)
    l = jnp.sum(p, axis=-1, keepdims=True)
    wv = wv_ref[...]
    z = jnp.dot(p.astype(wv.dtype), wv, preferred_element_type=jnp.float32)
    if approx_recip:
        z = z * pl.reciprocal(l, approx=True)
    else:
        z = z / l
    o_ref[...] = z.astype(o_ref.dtype)


def _hopfield_multi_kernel(r_ref, wkT_ref, wv_ref, o_ref,
                           m_sc, l_sc, acc_sc, *,
                           mask_width, tile_w, approx_recip):
    """Flash-style online softmax across width tiles (grid axis 1, 'arbitrary')."""
    j = pl.program_id(1)

    @pl.when(j == 0)
    def _():
        m_sc[...] = jnp.full(m_sc.shape, -jnp.inf, dtype=m_sc.dtype)
        l_sc[...] = jnp.zeros(l_sc.shape, dtype=l_sc.dtype)
        acc_sc[...] = jnp.zeros(acc_sc.shape, dtype=acc_sc.dtype)

    s = jnp.dot(r_ref[...], wkT_ref[...], preferred_element_type=jnp.float32)
    if mask_width is not None:  # fallback mask (only when no spare feature col)
        col = j * tile_w + lax.broadcasted_iota(jnp.int32, s.shape, 1)
        s = jnp.where(col < mask_width, s, -jnp.inf)

    m_prev = m_sc[...]
    m_new = jnp.maximum(m_prev, jnp.max(s, axis=-1, keepdims=True))
    alpha = jnp.exp(m_prev - m_new)
    p = jnp.exp(s - m_new)
    wv = wv_ref[...]
    l_sc[...] = alpha * l_sc[...] + jnp.sum(p, axis=-1, keepdims=True)
    acc_sc[...] = alpha * acc_sc[...] + jnp.dot(
        p.astype(wv.dtype), wv, preferred_element_type=jnp.float32)
    m_sc[...] = m_new

    @pl.when(j == pl.num_programs(1) - 1)
    def _():
        acc = acc_sc[...]
        l = l_sc[...]
        if approx_recip:
            acc = acc * pl.reciprocal(l, approx=True)
        else:
            acc = acc / l
        o_ref[...] = acc.astype(o_ref.dtype)


# ----------------------------------------------------------------------------
# Wrapper
# ----------------------------------------------------------------------------
def hopfield_layer(R, Wk, Wv, beta=0.1, *, tile_b=None, tile_w=None,
                   compute_dtype=jnp.bfloat16, weight_buffers=2,
                   approx_reciprocal=True):
    B, n = R.shape
    width, n2 = Wk.shape
    assert n == n2 and Wv.shape == (width, n)

    out_dtype = R.dtype
    cdt = jnp.dtype(compute_dtype)
    cb = cdt.itemsize
    ob = jnp.dtype(out_dtype).itemsize
    # sublane multiple: f32 -> 8, bf16 -> 16
    sub = max(8 * max(1, 4 // cb), 8 * max(1, 4 // ob))

    n_pad = _round_up(n, 128)

    # --- generation-aware VMEM budget ---------------------------------------
    vmem_cap = _vmem_capacity_bytes()
    if vmem_cap >= 100 * 1024 * 1024:          # v5e / v6e class (128 MiB physical)
        vmem_limit = 96 * 1024 * 1024
        plan_budget = 64 * 1024 * 1024
    else:                                      # v7x class (64 MiB) / unknown
        vmem_limit = 48 * 1024 * 1024
        plan_budget = 32 * 1024 * 1024
    num_cores = _num_tensorcores()

    # --- width tiling --------------------------------------------------------
    if tile_w is not None:
        tile_w = max(128, _round_up(tile_w, 128))
        w_pad = _round_up(width, tile_w)
    else:
        w_single = _round_up(width, 128)
        single_wbytes = 2 * 2 * w_single * n_pad * cb     # WkT + Wv, double-buffered
        if single_wbytes <= plan_budget // 2:
            tile_w = w_single
            w_pad = w_single
        else:
            weight_budget = int(plan_budget * 0.4)
            tile_w = 128
            for cand in (512, 256, 128):                  # fill the 256x256 MXU
                if 2 * max(2, weight_buffers) * cand * n_pad * cb <= weight_budget:
                    tile_w = cand
                    break
            w_pad = _round_up(width, tile_w)
    single_tile = (w_pad == tile_w)

    # --- batch tiling (grow to fill the VMEM budget) -------------------------
    if single_tile:
        wbytes = 2 * 2 * w_pad * n_pad * cb
        per_row = n_pad * (2 * cb + 2 * ob) + w_pad * 12          # + f32/bf16 temps
    else:
        wbytes = 2 * max(2, weight_buffers) * tile_w * n_pad * cb
        per_row = n_pad * (2 * cb + 2 * ob + 4) + tile_w * 12     # + f32 acc + temps

    if tile_b is None:
        avail = max(plan_budget - wbytes, sub * per_row)
        tile_b = max(sub, (avail // per_row) // sub * sub)
        tile_b = min(tile_b, _round_up(B, sub))
        if num_cores >= 2 and B > sub:
            # >=2 batch tiles so every TensorCore gets work (megacore / v7x).
            tile_b = min(tile_b, _round_up(pl.cdiv(B, num_cores), sub))
    tile_b = max(sub, _round_up(tile_b, sub))
    B_pad = _round_up(B, tile_b)

    # --- wrapper-side preprocessing (one-time, tiny) --------------------------
    # Fold beta into Wk; pad to lane-dense shapes; mask padded width columns via
    # a -1e30 bias carried in a spare padded feature column (free in the matmul).
    Wk_eff = Wk.astype(jnp.float32) * jnp.float32(beta)
    Wv_eff = Wv.astype(jnp.float32)
    Rp = R.astype(jnp.float32)

    pad_w, pad_n, pad_b = w_pad - width, n_pad - n, B_pad - B
    if pad_w or pad_n:
        Wk_eff = jnp.pad(Wk_eff, ((0, pad_w), (0, pad_n)))
        Wv_eff = jnp.pad(Wv_eff, ((0, pad_w), (0, pad_n)))
    if pad_b or pad_n:
        Rp = jnp.pad(Rp, ((0, pad_b), (0, pad_n)))

    mask_width = None
    if pad_w:
        if pad_n:
            Wk_eff = Wk_eff.at[width:, n].set(-1e30)   # padded patterns -> -inf score
            Rp = Rp.at[:, n].set(1.0)
        else:
            mask_width = width                          # rare fallback: in-kernel mask

    WkT = jnp.transpose(Wk_eff).astype(cdt)            # (n_pad, w_pad)  [K, N] RHS
    Wvp = Wv_eff.astype(cdt)                            # (w_pad, n_pad)
    Rp = Rp.astype(cdt)                                 # (B_pad, n_pad)

    # --- dispatch -------------------------------------------------------------
    if single_tile:
        kernel = functools.partial(_hopfield_single_kernel,
                                   mask_width=mask_width,
                                   approx_recip=approx_reciprocal)
        out = pl.pallas_call(
            kernel,
            out_shape=jax.ShapeDtypeStruct((B_pad, n_pad), out_dtype),
            grid_spec=pltpu.PrefetchScalarGridSpec(
                num_scalar_prefetch=0,
                grid=(B_pad // tile_b,),
                in_specs=[
                    pl.BlockSpec((tile_b, n_pad), lambda i: (i, 0)),   # R
                    pl.BlockSpec((n_pad, w_pad), lambda i: (0, 0)),    # Wk^T (resident)
                    pl.BlockSpec((w_pad, n_pad), lambda i: (0, 0)),    # Wv   (resident)
                ],
                out_specs=pl.BlockSpec((tile_b, n_pad), lambda i: (i, 0)),
            ),
            compiler_params=pltpu.CompilerParams(
                dimension_semantics=("parallel",),
                vmem_limit_bytes=vmem_limit,
            ),
        )(Rp, WkT, Wvp)
    else:
        kernel = functools.partial(_hopfield_multi_kernel,
                                   mask_width=mask_width, tile_w=tile_w,
                                   approx_recip=approx_reciprocal)
        if weight_buffers != 2:
            wk_spec = pl.BlockSpec((n_pad, tile_w), lambda i, j: (0, j),
                                   pipeline_mode=pl.Buffered(weight_buffers))
            wv_spec = pl.BlockSpec((tile_w, n_pad), lambda i, j: (j, 0),
                                   pipeline_mode=pl.Buffered(weight_buffers))
        else:
            wk_spec = pl.BlockSpec((n_pad, tile_w), lambda i, j: (0, j))
            wv_spec = pl.BlockSpec((tile_w, n_pad), lambda i, j: (j, 0))

        out = pl.pallas_call(
            kernel,
            out_shape=jax.ShapeDtypeStruct((B_pad, n_pad), out_dtype),
            grid_spec=pltpu.PrefetchScalarGridSpec(
                num_scalar_prefetch=0,
                grid=(B_pad // tile_b, w_pad // tile_w),
                in_specs=[
                    pl.BlockSpec((tile_b, n_pad), lambda i, j: (i, 0)),  # R (resident over j)
                    wk_spec,                                             # Wk^T width tile
                    wv_spec,                                             # Wv   width tile
                ],
                out_specs=pl.BlockSpec((tile_b, n_pad), lambda i, j: (i, 0)),
                scratch_shapes=[
                    pltpu.VMEM((tile_b, 1), jnp.float32),      # running max
                    pltpu.VMEM((tile_b, 1), jnp.float32),      # running denom
                    pltpu.VMEM((tile_b, n_pad), jnp.float32),  # output accumulator
                ],
            ),
            compiler_params=pltpu.CompilerParams(
                dimension_semantics=("parallel", "arbitrary"),
                vmem_limit_bytes=vmem_limit,
            ),
        )(Rp, WkT, Wvp)

    return out[:B, :n]


def hopfield_layer_ref(R, Wk, Wv, beta=0.1):
    """Pure-JAX reference (mirrors the PyTorch forward, f32)."""
    z0 = beta * (R @ Wk.T)
    z0 = jax.nn.softmax(z0, axis=-1)
    return z0 @ Wv


if __name__ == "__main__":
    key = jax.random.PRNGKey(0)

    # ---- case 1: demo shapes (single-width-tile fast path) -------------------
    n, width, beta, B = 32, 64, 0.1, 8
    k_r, k_wk, k_wv, key = jax.random.split(key, 4)
    scale = (1.0 / (width * n)) * 0.1            # matches torch.rand(...)*(1/(w*n))*0.1
    Wk = jax.random.uniform(k_wk, (width, n), dtype=jnp.float32) * scale
    Wv = jax.random.uniform(k_wv, (width, n), dtype=jnp.float32) * scale
    R = jax.random.normal(k_r, (B, n), dtype=jnp.float32)

    out = jax.block_until_ready(hopfield_layer(R, Wk, Wv, beta))
    ref = hopfield_layer_ref(R, Wk, Wv, beta)
    assert out.shape == (B, n)
    assert jnp.allclose(out, ref, rtol=2e-2, atol=1e-6), "mismatch (single-tile path)"

    # ---- case 2: force the multi-width-tile online-softmax path --------------
    n2, width2, B2 = 32, 320, 24
    k_r, k_wk, k_wv, key = jax.random.split(key, 4)
    scale2 = (1.0 / (width2 * n2)) * 0.1
    Wk2 = jax.random.uniform(k_wk, (width2, n2), dtype=jnp.float32) * scale2
    Wv2 = jax.random.uniform(k_wv, (width2, n2), dtype=jnp.float32) * scale2
    R2 = jax.random.normal(k_r, (B2, n2), dtype=jnp.float32)

    out2 = jax.block_until_ready(hopfield_layer(R2, Wk2, Wv2, beta, tile_w=128))
    ref2 = hopfield_layer_ref(R2, Wk2, Wv2, beta)
    assert out2.shape == (B2, n2)
    assert jnp.allclose(out2, ref2, rtol=2e-2, atol=1e-6), "mismatch (multi-tile path)"

    print("KERNEL_OK")
</pallas_src>

<mosaic_0001>
module attributes {stable_mosaic.version = 11 : i64} {
  func.func @_hopfield_single_kernel(%arg0: i32, %arg1: memref<16x128xbf16, #tpu.memory_space<vmem>>, %arg2: memref<128x128xbf16, #tpu.memory_space<vmem>>, %arg3: memref<128x128xbf16, #tpu.memory_space<vmem>>, %arg4: memref<16x128xf32, #tpu.memory_space<vmem>>) attributes {dimension_semantics = [#tpu.dimension_semantics<parallel>], iteration_bounds = array<i64: 1>, scalar_prefetch = 0 : i64, scratch_operands = 0 : i64, tpu.core_type = #tpu.core_type<tc>, window_params = [{transform_indices = @transform_0, window_bounds = array<i64: 16, 128>}, {pipeline_mode = #tpu.pipeline_mode<synchronous>, transform_indices = @transform_1, window_bounds = array<i64: 128, 128>}, {pipeline_mode = #tpu.pipeline_mode<synchronous>, transform_indices = @transform_2, window_bounds = array<i64: 128, 128>}, {transform_indices = @transform_3, window_bounds = array<i64: 16, 128>}]} {
    %c0 = arith.constant 0 : index
    %c0_0 = arith.constant 0 : index
    %0 = vector.load %arg1[%c0, %c0_0] : memref<16x128xbf16, #tpu.memory_space<vmem>>, vector<16x128xbf16>
    %c0_1 = arith.constant 0 : index
    %c0_2 = arith.constant 0 : index
    %1 = vector.load %arg2[%c0_1, %c0_2] : memref<128x128xbf16, #tpu.memory_space<vmem>>, vector<128x128xbf16>
    %cst = arith.constant dense<0.000000e+00> : vector<16x128xf32>
    %2 = tpu.matmul %0, %1, %cst {dimension_numbers = #tpu.dot_dimension_numbers<[1], [0], [0], [1], [0, 0, 1, 1], [], []>} : vector<16x128xbf16>, vector<128x128xbf16>, vector<16x128xf32> -> vector<16x128xf32>
    %cst_3 = arith.constant dense<0xFF800000> : vector<16xf32>
    %3 = vector.multi_reduction <maximumf>, %2, %cst_3 [1] : vector<16x128xf32> to vector<16xf32>
    %4 = vector.shape_cast %3 : vector<16xf32> to vector<16x1xf32>
    %5 = vector.broadcast %4 : vector<16x1xf32> to vector<16x128xf32>
    %6 = arith.subf %2, %5 : vector<16x128xf32>
    %7 = math.exp %6 : vector<16x128xf32>
    %cst_4 = arith.constant dense<0.000000e+00> : vector<16xf32>
    %8 = vector.multi_reduction <add>, %7, %cst_4 [1] : vector<16x128xf32> to vector<16xf32>
    %9 = vector.shape_cast %8 : vector<16xf32> to vector<16x1xf32>
    %c0_5 = arith.constant 0 : index
    %c0_6 = arith.constant 0 : index
    %10 = vector.load %arg3[%c0_5, %c0_6] : memref<128x128xbf16, #tpu.memory_space<vmem>>, vector<128x128xbf16>
    %11 = arith.truncf %7 : vector<16x128xf32> to vector<16x128xbf16>
    %cst_7 = arith.constant dense<0.000000e+00> : vector<16x128xf32>
    %12 = tpu.matmul %11, %10, %cst_7 {dimension_numbers = #tpu.dot_dimension_numbers<[1], [0], [0], [1], [0, 0, 1, 1], [], []>} : vector<16x128xbf16>, vector<128x128xbf16>, vector<16x128xf32> -> vector<16x128xf32>
    %13 = tpu.reciprocal %9 {approx = true} : vector<16x1xf32> -> vector<16x1xf32>
    %14 = vector.broadcast %13 : vector<16x1xf32> to vector<16x128xf32>
    %15 = arith.mulf %12, %14 : vector<16x128xf32>
    %c0_8 = arith.constant 0 : index
    %c0_9 = arith.constant 0 : index
    %16 = vector.load %arg4[%c0_8, %c0_9] : memref<16x128xf32, #tpu.memory_space<vmem>>, vector<16x128xf32>
    tpu.vector_store %arg4[%c0_8, %c0_9], %15 {strides = array<i32>} : memref<16x128xf32, #tpu.memory_space<vmem>>, vector<16x128xf32>,
    return
  }
  func.func @transform_0(%arg0: i32) -> (i32, i32) {
    %c0_i32 = arith.constant 0 : i32
    %c0_i32_0 = arith.constant 0 : i32
    return %arg0, %c0_i32 : i32, i32
  }
  func.func @transform_1(%arg0: i32) -> (i32, i32) {
    %c0_i32 = arith.constant 0 : i32
    %c0_i32_0 = arith.constant 0 : i32
    %c0_i32_1 = arith.constant 0 : i32
    return %c0_i32, %c0_i32_0 : i32, i32
  }
  func.func @transform_2(%arg0: i32) -> (i32, i32) {
    %c0_i32 = arith.constant 0 : i32
    %c0_i32_0 = arith.constant 0 : i32
    %c0_i32_1 = arith.constant 0 : i32
    return %c0_i32, %c0_i32_0 : i32, i32
  }
  func.func @transform_3(%arg0: i32) -> (i32, i32) {
    %c0_i32 = arith.constant 0 : i32
    %c0_i32_0 = arith.constant 0 : i32
    return %arg0, %c0_i32 : i32, i32
  }
}

</mosaic_0001>

<llo_original>
// kernel: tpu_custom_call.1
$region0: #{tpu_custom_call.1}
  #allocation0 [shape = 'u32[]', space=smem, size = 0x4, offset = 0x4, fixed_abs, tag = 'smem constant byte address 0x4 - core index']
  #allocation1 [shape = 'u32[72,128]{1,0:T(1,128)}', space=vmem, size = 0x9000, scoped, tag = 'internal scratch']
  %s0 = inlined_call_operand.hbm [shape: bf16[16,128], index: 0, kind: input, shape index: {}]
  %s1 = inlined_call_operand.hbm [shape: bf16[128,128], index: 1, kind: input, shape index: {}]
  %s2 = inlined_call_operand.hbm [shape: bf16[128,128], index: 2, kind: input, shape index: {}]
  %s3 = inlined_call_operand.hbm [shape: f32[16,128], index: 3, kind: output, shape index: {}]
  %s4 = sld [smem:[#allocation0]]
  $region34: #{tpu_custom_call.1} parent=0
    _
  %s6 = ssub.s32 1, %s4
  %s7 = scalar_select 0, %s6, %s4
  $region1: #{tpu_custom_call.1} parent=0
    #allocation2 [shape = 'u8[4096]{0}', space=vmem, size = 0x1000, scoped, tag = 'input window, operand 0, single buffered']
    #allocation3 [shape = 's32[1]{0}', space=sflag, size = 0x4, scoped, tag = 'scoped memory for tpu_custom_call.1']
    #allocation4 [shape = 's32[1]{0}', space=sflag, size = 0x4, scoped, tag = 'scoped memory for tpu_custom_call.1']
    #allocation5 [shape = 'u8[32768]{0}', space=vmem, size = 0x8000, scoped, tag = 'input window, operand 1, single buffered']
    #allocation6 [shape = 's32[1]{0}', space=sflag, size = 0x4, scoped, tag = 'scoped memory for tpu_custom_call.1']
    #allocation7 [shape = 'u8[32768]{0}', space=vmem, size = 0x8000, scoped, tag = 'input window, operand 2, single buffered']
    #allocation8 [shape = 'u8[8192]{0}', space=vmem, size = 0x2000, scoped, tag = 'output window, operand 0, single buffered']
    %8 = vsyncpa [#allocation3], 0
    %9 = vsyncpa [#allocation6], 0
    %10 = vsyncpa [#allocation4], 0
    // Predicated region
    $region2: #{tpu_custom_call.1} parent=1 // pred_check
      _
    $region3: #{tpu_custom_call.1} parent=1 // pred_check_branch
      %12 = sbr.rel (0) target = $region5
    $region4: #{tpu_custom_call.1} parent=1 // pred_region
      %14 = vsyncadd [#allocation3], 0
      %s15 = sshll.u32 %s0, 4
      %s16 = int_to_ptr.hbm [resolvable:$true] %s15
      %s17 = sshll.u32 [#allocation2], 4
      %s18 = int_to_ptr.vmem [resolvable:$true] %s17
      %23 = dma.hbm_to_vmem [thread:$0]  %s16, 128, %s18, [#allocation3], 64, 64, 4
    $region5: #{tpu_custom_call.1} parent=1 // pred_fallthru
      _
    // Predicated region
    $region6: #{tpu_custom_call.1} parent=1 // pred_check
      _
    $region7: #{tpu_custom_call.1} parent=1 // pred_check_branch
      %25 = sbr.rel (0) target = $region9
    $region8: #{tpu_custom_call.1} parent=1 // pred_region
      %27 = vsyncadd [#allocation6], 0
      %s28 = sshll.u32 %s1, 4
      %s29 = int_to_ptr.hbm [resolvable:$true] %s28
      %s30 = sshll.u32 [#allocation5], 4
      %s31 = int_to_ptr.vmem [resolvable:$true] %s30
      %36 = dma.hbm_to_vmem [thread:$0]  %s29, 1024, %s31, [#allocation6], 64, 64, 4
    $region9: #{tpu_custom_call.1} parent=1 // pred_fallthru
      _
    // Predicated region
    $region10: #{tpu_custom_call.1} parent=1 // pred_check
      _
    $region11: #{tpu_custom_call.1} parent=1 // pred_check_branch
      %38 = sbr.rel (0) target = $region13
    $region12: #{tpu_custom_call.1} parent=1 // pred_region
      %40 = vsyncadd [#allocation6], 0
      %s41 = sshll.u32 %s2, 4
      %s42 = int_to_ptr.hbm [resolvable:$true] %s41
      %s43 = sshll.u32 [#allocation7], 4
      %s44 = int_to_ptr.vmem [resolvable:$true] %s43
      %49 = dma.hbm_to_vmem [thread:$0]  %s42, 1024, %s44, [#allocation6], 64, 64, 4
    $region13: #{tpu_custom_call.1} parent=1 // pred_fallthru
      _
    // Predicated region
    $region14: #{tpu_custom_call.1} parent=1 // pred_check
      _
    $region15: #{tpu_custom_call.1} parent=1 // pred_check_branch
      %51 = sbr.rel (0) target = $region17
    $region16: #{tpu_custom_call.1} parent=1 // pred_region
      %53 = dma.done [#allocation3], 128
    $region17: #{tpu_custom_call.1} parent=1 // pred_fallthru
      _
    // Predicated region
    $region18: #{tpu_custom_call.1} parent=1 // pred_check
      _
    $region19: #{tpu_custom_call.1} parent=1 // pred_check_branch
      %55 = sbr.rel (0) target = $region21
    $region20: #{tpu_custom_call.1} parent=1 // pred_region
      %57 = dma.done [#allocation6], 1024
    $region21: #{tpu_custom_call.1} parent=1 // pred_fallthru
      _
    // Predicated region
    $region22: #{tpu_custom_call.1} parent=1 // pred_check
      _
    $region23: #{tpu_custom_call.1} parent=1 // pred_check_branch
      %59 = sbr.rel (0) target = $region25
    $region24: #{tpu_custom_call.1} parent=1 // pred_region
      %61 = dma.done [#allocation6], 1024
    $region25: #{tpu_custom_call.1} parent=1 // pred_fallthru
      _
    %v62 = vld [vmem:[#allocation2] sm:$0xf]
    %v63 = vld [vmem:[#allocation2 + $0x4] sm:$0xf]
    %v64 = vld [vmem:[#allocation5] sm:$0xf]
    %v65 = vld [vmem:[#allocation5 + $0x4] sm:$0xf]
    %v66 = vld [vmem:[#allocation5 + $0x8] sm:$0xf]
    %v67 = vld [vmem:[#allocation5 + $0xc] sm:$0xf]
    %v68 = vld [vmem:[#allocation5 + $0x10] sm:$0xf]
    %v69 = vld [vmem:[#allocation5 + $0x14] sm:$0xf]
    %v70 = vld [vmem:[#allocation5 + $0x18] sm:$0xf]
    %v71 = vld [vmem:[#allocation5 + $0x1c] sm:$0xf]
    %v72 = vld [vmem:[#allocation5 + $0x20] sm:$0xf]
    %v73 = vld [vmem:[#allocation5 + $0x24] sm:$0xf]
    %v74 = vld [vmem:[#allocation5 + $0x28] sm:$0xf]
    %v75 = vld [vmem:[#allocation5 + $0x2c] sm:$0xf]
    %v76 = vld [vmem:[#allocation5 + $0x30] sm:$0xf]
    %v77 = vld [vmem:[#allocation5 + $0x34] sm:$0xf]
    %v78 = vld [vmem:[#allocation5 + $0x38] sm:$0xf]
    %v79 = vld [vmem:[#allocation5 + $0x3c] sm:$0xf]
    %v82 = vunpack.c.l.b16 %v62
    %v83 = vunpack.c.l.b16 %v63
    %v84 = vpack.c.b16 %v83, %v82
    %v102 = vunpack.c.l.b16 %v64
    %v103 = vunpack.c.l.b16 %v65
    %v104 = vunpack.c.l.b16 %v66
    %v105 = vunpack.c.l.b16 %v67
    %v106 = vunpack.c.l.b16 %v68
    %v107 = vunpack.c.l.b16 %v69
    %v108 = vunpack.c.l.b16 %v70
    %v109 = vunpack.c.l.b16 %v71
    %v110 = vunpack.c.l.b16 %v72
    %v111 = vunpack.c.l.b16 %v73
    %v112 = vunpack.c.l.b16 %v74
    %v113 = vunpack.c.l.b16 %v75
    %v114 = vunpack.c.l.b16 %v76
    %v115 = vunpack.c.l.b16 %v77
    %v116 = vunpack.c.l.b16 %v78
    %v117 = vunpack.c.l.b16 %v79
    %v118 = vpack.c.b16 %v103, %v102
    %v119 = vpack.c.b16 %v105, %v104
    %v120 = vpack.c.b16 %v107, %v106
    %v121 = vpack.c.b16 %v109, %v108
    %v122 = vpack.c.b16 %v111, %v110
    %v123 = vpack.c.b16 %v113, %v112
    %v124 = vpack.c.b16 %v115, %v114
    %v125 = vpack.c.b16 %v117, %v116
    %134 = vmatpush.bf16.msra.mxu0 %v125
    %135 = vmatpush.bf16.msra.mxu0 %v124
    %136 = vmatpush.bf16.msra.mxu0 %v123
    %137 = vmatpush.bf16.msra.mxu0 %v122
    %138 = vmatpush.bf16.msra.mxu0 %v121
    %139 = vmatpush.bf16.msra.mxu0 %v120
    %140 = vmatpush.bf16.msra.mxu0 %v119
    %141 = vmatpush.bf16.msra.mxu0 %v118
    %142 = vmatmul.bf16.gmra.mxu0 %v84
    %v143 = vpop.f32.mrf.mxu0
    %v144 = vadd.f32 0.0, %v143
    %v145 = vpop.f32.mrf.mxu0
    %v146 = vadd.f32 0.0, %v145
    %147 = vdwg.mxu0
    %148 = vmax.xlane.f32.xlu0 %v144
    %v149 = vpop.xlane.xlu0 %148
    %150 = vmax.xlane.f32.xlu0 %v146
    %v151 = vpop.xlane.xlu0 %150
    %v152 = vsub.f32 %v144, %v149
    %v153 = vsub.f32 %v146, %v151
    %v154 = vmul.f32 %v152, 1.442695
    %v155 = vpow.pop %v154
    %v156 = vmul.f32 %v153, 1.442695
    %v157 = vpow.pop %v156
    %158 = vadd.xlane.f32.xlu0 %v155
    %v159 = vpop.xlane.xlu0 %158
    %160 = vadd.xlane.f32.xlu0 %v157
    %v161 = vpop.xlane.xlu0 %160
    %v162 = vld [vmem:[#allocation7] sm:$0xf]
    %v163 = vld [vmem:[#allocation7 + $0x4] sm:$0xf]
    %v164 = vld [vmem:[#allocation7 + $0x8] sm:$0xf]
    %v165 = vld [vmem:[#allocation7 + $0xc] sm:$0xf]
    %v166 = vld [vmem:[#allocation7 + $0x10] sm:$0xf]
    %v167 = vld [vmem:[#allocation7 + $0x14] sm:$0xf]
    %v168 = vld [vmem:[#allocation7 + $0x18] sm:$0xf]
    %v169 = vld [vmem:[#allocation7 + $0x1c] sm:$0xf]
    %v170 = vld [vmem:[#allocation7 + $0x20] sm:$0xf]
    %v171 = vld [vmem:[#allocation7 + $0x24] sm:$0xf]
    %v172 = vld [vmem:[#allocation7 + $0x28] sm:$0xf]
    %v173 = vld [vmem:[#allocation7 + $0x2c] sm:$0xf]
    %v174 = vld [vmem:[#allocation7 + $0x30] sm:$0xf]
    %v175 = vld [vmem:[#allocation7 + $0x34] sm:$0xf]
    %v176 = vld [vmem:[#allocation7 + $0x38] sm:$0xf]
    %v177 = vld [vmem:[#allocation7 + $0x3c] sm:$0xf]
    %v178 = vpack.c.bf16 %v157, %v155
    %v195 = vunpack.c.l.b16 %v162
    %v196 = vunpack.c.l.b16 %v163
    %v197 = vunpack.c.l.b16 %v164
    %v198 = vunpack.c.l.b16 %v165
    %v199 = vunpack.c.l.b16 %v166
    %v200 = vunpack.c.l.b16 %v167
    %v201 = vunpack.c.l.b16 %v168
    %v202 = vunpack.c.l.b16 %v169
    %v203 = vunpack.c.l.b16 %v170
    %v204 = vunpack.c.l.b16 %v171
    %v205 = vunpack.c.l.b16 %v172
    %v206 = vunpack.c.l.b16 %v173
    %v207 = vunpack.c.l.b16 %v174
    %v208 = vunpack.c.l.b16 %v175
    %v209 = vunpack.c.l.b16 %v176
    %v210 = vunpack.c.l.b16 %v177
    %v211 = vpack.c.b16 %v196, %v195
    %v212 = vpack.c.b16 %v198, %v197
    %v213 = vpack.c.b16 %v200, %v199
    %v214 = vpack.c.b16 %v202, %v201
    %v215 = vpack.c.b16 %v204, %v203
    %v216 = vpack.c.b16 %v206, %v205
    %v217 = vpack.c.b16 %v208, %v207
    %v218 = vpack.c.b16 %v210, %v209
    %227 = vmatpush.bf16.msra.mxu0 %v218
    %228 = vmatpush.bf16.msra.mxu0 %v217
    %229 = vmatpush.bf16.msra.mxu0 %v216
    %230 = vmatpush.bf16.msra.mxu0 %v215
    %231 = vmatpush.bf16.msra.mxu0 %v214
    %232 = vmatpush.bf16.msra.mxu0 %v213
    %233 = vmatpush.bf16.msra.mxu0 %v212
    %234 = vmatpush.bf16.msra.mxu0 %v211
    %235 = vmatmul.bf16.gmra.mxu0 %v178
    %v236 = vpop.f32.mrf.mxu0
    %v237 = vadd.f32 0.0, %v236
    %v238 = vpop.f32.mrf.mxu0
    %v239 = vadd.f32 0.0, %v238
    %240 = vdwg.mxu0
    %v241 = vrcp.pop %v159
    %v242 = vrcp.pop %v161
    %v243 = vmul.f32 %v237, %v241
    %v244 = vmul.f32 %v239, %v242
    %245 = vst [vmem:[#allocation8] sm:$0xff] %v243
    %246 = vst [vmem:[#allocation8 + $0x8] sm:$0xff] %v244
    // Predicated region
    $region26: #{tpu_custom_call.1} parent=1 // pred_check
      _
    $region27: #{tpu_custom_call.1} parent=1 // pred_check_branch
      %248 = sbr.rel (0) target = $region29
    $region28: #{tpu_custom_call.1} parent=1 // pred_region
      %250 = vsyncadd [#allocation4], 0
      %s251 = sshll.u32 [#allocation8], 4
      %s252 = int_to_ptr.vmem [resolvable:$true] %s251
      %s253 = sshll.u32 %s3, 4
      %s254 = int_to_ptr.hbm [resolvable:$true] %s253
      %259 = dma.vmem_to_hbm [thread:$0]  %s252, 256, %s254, [#allocation4], 128, 128, 8
    $region29: #{tpu_custom_call.1} parent=1 // pred_fallthru
      _
    // Predicated region
    $region30: #{tpu_custom_call.1} parent=1 // pred_check
      _
    $region31: #{tpu_custom_call.1} parent=1 // pred_check_branch
      %261 = sbr.rel (0) target = $region33
    $region32: #{tpu_custom_call.1} parent=1 // pred_region
      %263 = dma.done [#allocation4], 256
    $region33: #{tpu_custom_call.1} parent=1 // pred_fallthru
      _
    %264 = vsyncpa [#allocation3], 1
    %265 = vsyncpa [#allocation6], 1
    %266 = vsyncpa [#allocation4], 1

</llo_original>
